<compile_context>
chip_gen: v5e
topology: v5e:2x2
jax: 0.10.0
libtpu: 0.0.40
codegen_flags: <defaults>
</compile_context>

<pallas_src>
from functools import partial

import jax
import jax.numpy as jnp
from jax import lax
from jax.experimental import pallas as pl
from jax.experimental.pallas import tpu as pltpu


def _dgm_adj_kernel(params_ref, xr_ref, xat_ref, rn_ref, cn_ref, a_ref):
    """One (batch, row-tile) block of A = sigmoid(t * (thr - cdist(xs, xs)^2))."""
    t = params_ref[0]        # temperature
    thr = params_ref[1]      # |threshold|

    xr = xr_ref[0]           # (tile_rows, D)  scaled/centered row tile
    xat = xat_ref[0]         # (D, N)          all nodes, transposed (lane-dense along N)
    rn = rn_ref[0]           # (tile_rows, 1)  per-row squared norms
    cn = cn_ref[0]           # (1, N)          per-column squared norms

    # Gram block on the MXU: (tile_rows, D) x (D, N) -> (tile_rows, N)
    g = lax.dot_general(xr, xat, (((1,), (0,)), ((), ())),
                        preferred_element_type=jnp.float32)

    # Squared euclidean distances, clamped at 0 (matches cdist(..)**2 non-negativity;
    # the Gram trick can dip slightly negative for near-duplicate points).
    d2 = jnp.maximum(rn + cn - 2.0 * g, 0.0)

    z = t * (thr - d2)
    # sigmoid(z) = 0.5 * (tanh(z / 2) + 1): one EUP push, no f32 divide.
    a_ref[0] = (0.5 * jnp.tanh(0.5 * z) + 0.5).astype(a_ref.dtype)


def _round_up(x, m):
    return (x + m - 1) // m * m


def _pick_tile_rows(n_nodes, batch, itemsize=4, target_bytes=6 << 20):
    """Byte-bounded row tile (multiple of 8 sublanes), lane-dense along the full N axis."""
    full_bytes = n_nodes * n_nodes * itemsize
    if full_bytes <= target_bytes:
        # Whole row-block fits in one tile.  If the batch axis alone cannot feed both
        # v7x TensorCores, split rows so the second parallel grid axis has >1 step.
        if batch % 2 == 1 and n_nodes >= 16:
            return int(min(_round_up(-(-n_nodes // 2), 8), n_nodes))
        return int(n_nodes)
    tr = (target_bytes // (n_nodes * itemsize)) // 8 * 8
    return int(max(8, min(tr, n_nodes)))


@partial(jax.jit, static_argnames=("out_dtype",))
def _dgm_adjacency(xs, temperature, threshold_abs, out_dtype=jnp.float32):
    """A = sigmoid(temperature * (|threshold| - cdist(xs, xs)**2)) for xs of shape (B, N, D)."""
    B, N, D = xs.shape
    xs = xs.astype(jnp.float32)

    # Cheap O(B*N*D) prep: transposed operand (lane-dense along N) and per-node norms.
    xs_t = jnp.swapaxes(xs, -1, -2)                  # (B, D, N)
    norms = jnp.sum(xs * xs, axis=-1)                # (B, N)
    rn = norms[:, :, None]                           # (B, N, 1) row squared norms
    cn = norms[:, None, :]                           # (B, 1, N) column squared norms
    params = jnp.stack([jnp.asarray(temperature, jnp.float32),
                        jnp.asarray(threshold_abs, jnp.float32)])

    tile_rows = _pick_tile_rows(N, B, jnp.dtype(out_dtype).itemsize)
    grid = (B, pl.cdiv(N, tile_rows))

    return pl.pallas_call(
        _dgm_adj_kernel,
        out_shape=jax.ShapeDtypeStruct((B, N, N), out_dtype),
        grid_spec=pltpu.PrefetchScalarGridSpec(
            num_scalar_prefetch=0,
            grid=grid,
            in_specs=[
                pl.BlockSpec(memory_space=pltpu.MemorySpace.SMEM),         # params (2,)
                pl.BlockSpec((1, tile_rows, D), lambda b, i: (b, i, 0)),   # xs row tile
                pl.BlockSpec((1, D, N), lambda b, i: (b, 0, 0)),           # xs^T all nodes
                pl.BlockSpec((1, tile_rows, 1), lambda b, i: (b, i, 0)),   # row sq. norms
                pl.BlockSpec((1, 1, N), lambda b, i: (b, 0, 0)),           # col sq. norms
            ],
            out_specs=pl.BlockSpec((1, tile_rows, N), lambda b, i: (b, i, 0)),
        ),
        compiler_params=pltpu.CompilerParams(
            dimension_semantics=("parallel", "parallel"),
            vmem_limit_bytes=32 * 1024 * 1024,
        ),
    )(params, xs, xs_t, rn, cn)


class DGMcPallas:
    """JAX/Pallas equivalent of DGMlib DGM_c (continuous differentiable graph module)."""

    input_dim = 4
    debug = False

    def __init__(self, embed_f=None, k=None, distance="euclidean",
                 adjacency_dtype=jnp.float32):
        if embed_f is None:
            # TODO(synk): embed_f is a user-supplied external module in DGM_c; identity here.
            embed_f = lambda x, A: x
        self.embed_f = embed_f
        self.distance = distance
        self.adjacency_dtype = adjacency_dtype  # bf16 halves HBM write bytes if tolerated
        self.temperature = jnp.float32(1.0)
        self.threshold = jnp.float32(0.5)
        self.scale = jnp.float32(-1.0)                                   # non-trainable
        self.centroid = jnp.zeros((1, 1, self.input_dim), jnp.float32)   # non-trainable

    def __call__(self, x, A, not_used=None, fixedges=None):
        x = self.embed_f(x, A)

        # One-time centroid/scale initialization (mirrors PyTorch `if self.scale < 0`).
        # Note: this host-level check mutates module state and forces a sync, exactly as
        # the torch module does; don't trace __call__ itself through jit/vmap/scan.
        if float(self.scale) < 0:
            self.centroid = jnp.mean(x, axis=-2, keepdims=True)
            self.scale = (0.9 / jnp.max(jnp.abs(x - self.centroid))).astype(jnp.float32)

        if self.distance == "hyperbolic":
            # TODO(synk): pairwise_poincare_distances (arccosh branch) not implemented in Pallas.
            raise NotImplementedError("hyperbolic distance not implemented")

        xs = (x - self.centroid) * self.scale
        squeeze = xs.ndim == 2
        xs3 = xs[None] if squeeze else xs

        A_out = _dgm_adjacency(xs3, self.temperature, jnp.abs(self.threshold),
                               out_dtype=self.adjacency_dtype)
        if squeeze:
            A_out = A_out[0]
        return (x, A_out, None)


def _reference_adjacency(x):
    """Pure-JAX reference of the same forward pass (fresh module: scale/centroid init)."""
    centroid = jnp.mean(x, axis=-2, keepdims=True)
    scale = 0.9 / jnp.max(jnp.abs(x - centroid))
    xs = (x - centroid) * scale
    d = jnp.sum((xs[:, :, None, :] - xs[:, None, :, :]) ** 2, axis=-1)
    return jax.nn.sigmoid(jnp.float32(1.0) * (jnp.abs(jnp.float32(0.5)) - d))


if __name__ == "__main__":
    key = jax.random.PRNGKey(0)
    kx, ka, kx2, ka2 = jax.random.split(key, 4)

    # Case 1: batch=2, 16 nodes, feature dim 4 (single-tile-per-batch path).
    B, N, D = 2, 16, DGMcPallas.input_dim
    x = jax.random.normal(kx, (B, N, D), dtype=jnp.float32)
    A_in = jax.random.uniform(ka, (B, N, N), dtype=jnp.float32)  # unused by identity embed_f

    dgm = DGMcPallas()
    x_out, A_out, none_out = dgm(x, A_in)
    x_out, A_out = jax.block_until_ready((x_out, A_out))

    A_ref = _reference_adjacency(x)
    assert none_out is None
    assert x_out.shape == x.shape and x_out.dtype == x.dtype
    assert A_out.shape == (B, N, N) and A_out.dtype == jnp.float32
    assert jnp.array_equal(x_out, x)
    assert bool(jnp.allclose(A_out, A_ref, rtol=1e-5, atol=1e-5)), \
        float(jnp.max(jnp.abs(A_out - A_ref)))

    # Case 2: batch=1, 32 nodes — exercises the row-split (multi-tile) grid path.
    B2, N2 = 1, 32
    x2 = jax.random.normal(kx2, (B2, N2, D), dtype=jnp.float32)
    A_in2 = jax.random.uniform(ka2, (B2, N2, N2), dtype=jnp.float32)

    dgm2 = DGMcPallas()
    x_out2, A_out2, _ = dgm2(x2, A_in2)
    A_out2 = jax.block_until_ready(A_out2)
    A_ref2 = _reference_adjacency(x2)
    assert A_out2.shape == (B2, N2, N2)
    assert bool(jnp.allclose(A_out2, A_ref2, rtol=1e-5, atol=1e-5)), \
        float(jnp.max(jnp.abs(A_out2 - A_ref2)))

    print("KERNEL_OK")
</pallas_src>

<mosaic_0001>
module attributes {stable_mosaic.version = 11 : i64} {
  func.func @_dgm_adj_kernel(%arg0: i32, %arg1: i32, %arg2: memref<2xf32, #tpu.memory_space<smem>>, %arg3: memref<1x16x4xf32, #tpu.memory_space<vmem>>, %arg4: memref<1x4x16xf32, #tpu.memory_space<vmem>>, %arg5: memref<1x16x1xf32, #tpu.memory_space<vmem>>, %arg6: memref<1x1x16xf32, #tpu.memory_space<vmem>>, %arg7: memref<1x16x16xf32, #tpu.memory_space<vmem>>) attributes {dimension_semantics = [#tpu.dimension_semantics<parallel>, #tpu.dimension_semantics<parallel>], iteration_bounds = array<i64: 2, 1>, scalar_prefetch = 0 : i64, scratch_operands = 0 : i64, tpu.core_type = #tpu.core_type<tc>, window_params = [{transform_indices = @transform_0, window_bounds = array<i64: 2>}, {transform_indices = @transform_1, window_bounds = array<i64: 1, 16, 4>}, {transform_indices = @transform_2, window_bounds = array<i64: 1, 4, 16>}, {transform_indices = @transform_3, window_bounds = array<i64: 1, 16, 1>}, {transform_indices = @transform_4, window_bounds = array<i64: 1, 1, 16>}, {transform_indices = @transform_5, window_bounds = array<i64: 1, 16, 16>}]} {
    %c0 = arith.constant 0 : index
    %0 = memref.load %arg2[%c0] : memref<2xf32, #tpu.memory_space<smem>>
    %c1 = arith.constant 1 : index
    %1 = memref.load %arg2[%c1] : memref<2xf32, #tpu.memory_space<smem>>
    %c0_0 = arith.constant 0 : index
    %c0_1 = arith.constant 0 : index
    %c0_2 = arith.constant 0 : index
    %2 = vector.load %arg3[%c0_0, %c0_1, %c0_2] : memref<1x16x4xf32, #tpu.memory_space<vmem>>, vector<1x16x4xf32>
    %3 = vector.shape_cast %2 : vector<1x16x4xf32> to vector<16x4xf32>
    %c0_3 = arith.constant 0 : index
    %c0_4 = arith.constant 0 : index
    %c0_5 = arith.constant 0 : index
    %4 = vector.load %arg4[%c0_3, %c0_4, %c0_5] : memref<1x4x16xf32, #tpu.memory_space<vmem>>, vector<1x4x16xf32>
    %5 = vector.shape_cast %4 : vector<1x4x16xf32> to vector<4x16xf32>
    %c0_6 = arith.constant 0 : index
    %c0_7 = arith.constant 0 : index
    %c0_8 = arith.constant 0 : index
    %6 = vector.load %arg5[%c0_6, %c0_7, %c0_8] : memref<1x16x1xf32, #tpu.memory_space<vmem>>, vector<1x16x1xf32>
    %7 = vector.shape_cast %6 : vector<1x16x1xf32> to vector<16x1xf32>
    %c0_9 = arith.constant 0 : index
    %c0_10 = arith.constant 0 : index
    %c0_11 = arith.constant 0 : index
    %8 = vector.load %arg6[%c0_9, %c0_10, %c0_11] : memref<1x1x16xf32, #tpu.memory_space<vmem>>, vector<1x1x16xf32>
    %9 = vector.shape_cast %8 : vector<1x1x16xf32> to vector<1x16xf32>
    %cst = arith.constant dense<0.000000e+00> : vector<16x16xf32>
    %10 = tpu.matmul %3, %5, %cst {dimension_numbers = #tpu.dot_dimension_numbers<[1], [0], [0], [1], [0, 0, 1, 1], [], []>} : vector<16x4xf32>, vector<4x16xf32>, vector<16x16xf32> -> vector<16x16xf32>
    %11 = vector.broadcast %7 : vector<16x1xf32> to vector<16x16xf32>
    %12 = vector.broadcast %9 : vector<1x16xf32> to vector<16x16xf32>
    %13 = arith.addf %11, %12 : vector<16x16xf32>
    %cst_12 = arith.constant 2.000000e+00 : f32
    %14 = vector.broadcast %cst_12 : f32 to vector<16x16xf32>
    %15 = arith.mulf %14, %10 : vector<16x16xf32>
    %16 = arith.subf %13, %15 : vector<16x16xf32>
    %cst_13 = arith.constant 0.000000e+00 : f32
    %17 = vector.broadcast %cst_13 : f32 to vector<16x16xf32>
    %18 = arith.maximumf %16, %17 : vector<16x16xf32>
    %19 = vector.broadcast %1 : f32 to vector<16x16xf32>
    %20 = arith.subf %19, %18 : vector<16x16xf32>
    %21 = vector.broadcast %0 : f32 to vector<16x16xf32>
    %22 = arith.mulf %21, %20 : vector<16x16xf32>
    %cst_14 = arith.constant 5.000000e-01 : f32
    %23 = vector.broadcast %cst_14 : f32 to vector<16x16xf32>
    %24 = arith.mulf %23, %22 : vector<16x16xf32>
    %25 = math.tanh %24 : vector<16x16xf32>
    %cst_15 = arith.constant 5.000000e-01 : f32
    %26 = vector.broadcast %cst_15 : f32 to vector<16x16xf32>
    %27 = arith.mulf %26, %25 : vector<16x16xf32>
    %cst_16 = arith.constant 5.000000e-01 : f32
    %28 = vector.broadcast %cst_16 : f32 to vector<16x16xf32>
    %29 = arith.addf %27, %28 : vector<16x16xf32>
    %c0_17 = arith.constant 0 : index
    %c0_18 = arith.constant 0 : index
    %c0_19 = arith.constant 0 : index
    %30 = vector.load %arg7[%c0_17, %c0_18, %c0_19] : memref<1x16x16xf32, #tpu.memory_space<vmem>>, vector<1x16x16xf32>
    %31 = vector.shape_cast %30 : vector<1x16x16xf32> to vector<16x16xf32>
    %32 = vector.shape_cast %29 : vector<16x16xf32> to vector<1x16x16xf32>
    tpu.vector_store %arg7[%c0_17, %c0_18, %c0_19], %32 {strides = array<i32>} : memref<1x16x16xf32, #tpu.memory_space<vmem>>, vector<1x16x16xf32>,
    return
  }
  func.func @transform_0(%arg0: i32, %arg1: i32) -> i32 {
    %c0_i32 = arith.constant 0 : i32
    %c0_i32_0 = arith.constant 0 : i32
    return %c0_i32 : i32
  }
  func.func @transform_1(%arg0: i32, %arg1: i32) -> (i32, i32, i32) {
    %c0_i32 = arith.constant 0 : i32
    %c0_i32_0 = arith.constant 0 : i32
    return %arg0, %arg1, %c0_i32 : i32, i32, i32
  }
  func.func @transform_2(%arg0: i32, %arg1: i32) -> (i32, i32, i32) {
    %c0_i32 = arith.constant 0 : i32
    %c0_i32_0 = arith.constant 0 : i32
    %c0_i32_1 = arith.constant 0 : i32
    return %arg0, %c0_i32, %c0_i32_0 : i32, i32, i32
  }
  func.func @transform_3(%arg0: i32, %arg1: i32) -> (i32, i32, i32) {
    %c0_i32 = arith.constant 0 : i32
    %c0_i32_0 = arith.constant 0 : i32
    return %arg0, %arg1, %c0_i32 : i32, i32, i32
  }
  func.func @transform_4(%arg0: i32, %arg1: i32) -> (i32, i32, i32) {
    %c0_i32 = arith.constant 0 : i32
    %c0_i32_0 = arith.constant 0 : i32
    %c0_i32_1 = arith.constant 0 : i32
    return %arg0, %c0_i32, %c0_i32_0 : i32, i32, i32
  }
  func.func @transform_5(%arg0: i32, %arg1: i32) -> (i32, i32, i32) {
    %c0_i32 = arith.constant 0 : i32
    %c0_i32_0 = arith.constant 0 : i32
    return %arg0, %arg1, %c0_i32 : i32, i32, i32
  }
}

</mosaic_0001>

<llo_original>
// kernel: _dgm_adjacency.1
$region0: #{_dgm_adjacency.1}
  #allocation0 [shape = 'u32[]', space=smem, size = 0x4, offset = 0x4, fixed_abs, tag = 'smem constant byte address 0x4 - core index']
  #allocation1 [shape = 'u32[72,128]{1,0:T(1,128)}', space=vmem, size = 0x9000, scoped, tag = 'internal scratch']
  %s0 = inlined_call_operand.vmem [shape: f32[2], index: 0, kind: input, shape index: {}]
  %s1 = inlined_call_operand.vmem [shape: f32[2,16,4], index: 1, kind: input, shape index: {}]
  %s2 = inlined_call_operand.vmem [shape: f32[2,4,16], index: 2, kind: input, shape index: {}]
  %s3 = inlined_call_operand.vmem [shape: f32[2,16,1], index: 3, kind: input, shape index: {}]
  %s4 = inlined_call_operand.vmem [shape: f32[2,1,16], index: 4, kind: input, shape index: {}]
  %s5 = inlined_call_operand.hbm [shape: f32[2,16,16], index: 5, kind: output, shape index: {}]
  %s6 = sld [smem:[#allocation0]]
  $region57: #{_dgm_adjacency.1} parent=0
    _
  %s8 = ssub.s32 1, %s6
  %s9 = scalar_select 0, %s8, %s6
  $region1: #{_dgm_adjacency.1} parent=0
    #allocation2 [shape = 'u8[512]{0}', space=smem, size = 0x200, scoped, tag = 'input window, operand 0, single buffered']
    #allocation3 [shape = 's32[2]{0}', space=sflag, size = 0x8, scoped, tag = 'scoped memory for _dgm_adjacency.1']
    #allocation4 [shape = 's32[2]{0}', space=sflag, size = 0x8, scoped, tag = 'scoped memory for _dgm_adjacency.1']
    #allocation5 [shape = 'u8[16384]{0}', space=vmem, size = 0x4000, scoped, tag = 'output window, operand 0']
    %10 = vsyncpa [#allocation4], 0
    %11 = vsyncpa [#allocation3], 0
    %s12 = scalar_lea.sflag [#allocation3], 1
    %13 = vsyncpa %s12, 0
    loop: start=0, step=1, limit=4
    $region2: #{_dgm_adjacency.1} parent=1 // loop_pre_header
      _
    $region3: #{_dgm_adjacency.1} parent=1 // loop_header
      %s15 = sphi 0, %s19
      %p16 = scmp.ge.s32.totalorder %s15, 4
      %s22 = sphi 0, %s34
      %s23 = sphi 0, %s30
      %s24 = sphi 0, %s22
      %s25 = sphi 0, %s23
      %s26 = sphi 0, %s24
      %s27 = sphi 0, %s25
      %s35 = sphi 0, %s35
      %s37 = sphi 0, %s35
      %s38 = sphi 0, %s37
      %s52 = sphi 0, %s38
      %s60 = sphi 0, %s62
      %s63 = sphi 0, %s60
      %s64 = sphi 0, %s63
      %s80 = sphi 0, %s64
      %s86 = sphi 0, %s88
      %s89 = sphi 0, %s86
      %s90 = sphi 0, %s89
      %s106 = sphi 0, %s90
      %s114 = sphi 0, %s116
      %s117 = sphi 0, %s114
      %s118 = sphi 0, %s117
      %s134 = sphi 0, %s118
      %s140 = sphi 0, %s142
      %s143 = sphi 0, %s140
      %s144 = sphi 0, %s143
      %s160 = sphi 0, %s144
      %s168 = sphi 0, %s170
      %s171 = sphi 0, %s168
      %s172 = sphi 0, %s171
      %s188 = sphi 0, %s172
    $region4: #{_dgm_adjacency.1} parent=1 // loop_header_branch
      %18 = sbr.rel (%p16) target = $region8
    $region5: #{_dgm_adjacency.1} parent=1 // loop_body
      %s20 = ssub.s32 %s15, 1
      %s21 = ssub.s32 %s15, 2
      %s28 = sadd.s32 1, %s23
      %p29 = scmp.ge.s32.totalorder %s28, 1
      %s30 = scalar_select %p29, 0, %s28
      %s31 = sadd.s32 1, %s22
      %s32 = scalar_select %p29, %s31, %s22
      %p33 = scmp.ge.s32.totalorder %s32, 2
      %s34 = scalar_select %p33, 0, %s32
      %s36 = sadd.s32 %s35, 1
      %p39 = scmp.eq.s32.totalorder %s15, 1
      %p40 = scmp.ne.s32.totalorder %s35, %s37
      %p41 = scmp.eq.s32.totalorder %s15, 0
      %p42 = por %p40, %p41
      %p43 = scmp.ne.s32.totalorder %s35, %s37
      %p44 = scmp.eq.s32.totalorder %s20, 1
      %p45 = por %p43, %p44
      %p46 = scmp.ne.s32.totalorder %s37, %s38
      %p47 = scmp.eq.s32.totalorder %s20, 0
      %p48 = por %p46, %p47
      %p49 = scmp.ne.s32.totalorder %s37, %s38
      %p50 = scmp.eq.s32.totalorder %s21, 1
      %p51 = por %p49, %p50
      %p53 = scmp.ne.s32.totalorder %s38, %s52
      %p54 = scmp.eq.s32.totalorder %s21, 0
      %p55 = por %p53, %p54
      %s56 = ssub.s32 %s22, %s34
      %s57 = ssub.s32 %s23, %s30
      %s58 = sor.u32 %s56, %s57
      %p59 = scmp.eq.s32.totalorder %s58, 0
      %s61 = sadd.s32 %s60, 1
      %s62 = scalar_select %p59, %s60, %s61
      %p65 = pneg %p59
      %p66 = scmp.eq.s32.totalorder %s15, 1
      %p67 = por %p65, %p66
      %p68 = scmp.ne.s32.totalorder %s60, %s63
      %p69 = scmp.eq.s32.totalorder %s15, 0
      %p70 = por %p68, %p69
      %p71 = scmp.ne.s32.totalorder %s60, %s63
      %p72 = scmp.eq.s32.totalorder %s20, 1
      %p73 = por %p71, %p72
      %p74 = scmp.ne.s32.totalorder %s63, %s64
      %p75 = scmp.eq.s32.totalorder %s20, 0
      %p76 = por %p74, %p75
      %p77 = scmp.ne.s32.totalorder %s63, %s64
      %p78 = scmp.eq.s32.totalorder %s21, 1
      %p79 = por %p77, %p78
      %p81 = scmp.ne.s32.totalorder %s64, %s80
      %p82 = scmp.eq.s32.totalorder %s21, 0
      %p83 = por %p81, %p82
      %s84 = ssub.s32 %s22, %s34
      %p85 = scmp.eq.s32.totalorder %s84, 0
      %s87 = sadd.s32 %s86, 1
      %s88 = scalar_select %p85, %s86, %s87
      %p91 = pneg %p85
      %p92 = scmp.eq.s32.totalorder %s15, 1
      %p93 = por %p91, %p92
      %p94 = scmp.ne.s32.totalorder %s86, %s89
      %p95 = scmp.eq.s32.totalorder %s15, 0
      %p96 = por %p94, %p95
      %p97 = scmp.ne.s32.totalorder %s86, %s89
      %p98 = scmp.eq.s32.totalorder %s20, 1
      %p99 = por %p97, %p98
      %p100 = scmp.ne.s32.totalorder %s89, %s90
      %p101 = scmp.eq.s32.totalorder %s20, 0
      %p102 = por %p100, %p101
      %p103 = scmp.ne.s32.totalorder %s89, %s90
      %p104 = scmp.eq.s32.totalorder %s21, 1
      %p105 = por %p103, %p104
      %p107 = scmp.ne.s32.totalorder %s90, %s106
      %p108 = scmp.eq.s32.totalorder %s21, 0
      %p109 = por %p107, %p108
      %s110 = ssub.s32 %s22, %s34
      %s111 = ssub.s32 %s23, %s30
      %s112 = sor.u32 %s110, %s111
      %p113 = scmp.eq.s32.totalorder %s112, 0
      %s115 = sadd.s32 %s114, 1
      %s116 = scalar_select %p113, %s114, %s115
      %p119 = pneg %p113
      %p120 = scmp.eq.s32.totalorder %s15, 1
      %p121 = por %p119, %p120
      %p122 = scmp.ne.s32.totalorder %s114, %s117
      %p123 = scmp.eq.s32.totalorder %s15, 0
      %p124 = por %p122, %p123
      %p125 = scmp.ne.s32.totalorder %s114, %s117
      %p126 = scmp.eq.s32.totalorder %s20, 1
      %p127 = por %p125, %p126
      %p128 = scmp.ne.s32.totalorder %s117, %s118
      %p129 = scmp.eq.s32.totalorder %s20, 0
      %p130 = por %p128, %p129
      %p131 = scmp.ne.s32.totalorder %s117, %s118
      %p132 = scmp.eq.s32.totalorder %s21, 1
      %p133 = por %p131, %p132
      %p135 = scmp.ne.s32.totalorder %s118, %s134
      %p136 = scmp.eq.s32.totalorder %s21, 0
      %p137 = por %p135, %p136
      %s138 = ssub.s32 %s22, %s34
      %p139 = scmp.eq.s32.totalorder %s138, 0
      %s141 = sadd.s32 %s140, 1
      %s142 = scalar_select %p139, %s140, %s141
      %p145 = pneg %p139
      %p146 = scmp.eq.s32.totalorder %s15, 1
      %p147 = por %p145, %p146
      %p148 = scmp.ne.s32.totalorder %s140, %s143
      %p149 = scmp.eq.s32.totalorder %s15, 0
      %p150 = por %p148, %p149
      %p151 = scmp.ne.s32.totalorder %s140, %s143
      %p152 = scmp.eq.s32.totalorder %s20, 1
      %p153 = por %p151, %p152
      %p154 = scmp.ne.s32.totalorder %s143, %s144
      %p155 = scmp.eq.s32.totalorder %s20, 0
      %p156 = por %p154, %p155
      %p157 = scmp.ne.s32.totalorder %s143, %s144
      %p158 = scmp.eq.s32.totalorder %s21, 1
      %p159 = por %p157, %p158
      %p161 = scmp.ne.s32.totalorder %s144, %s160
      %p162 = scmp.eq.s32.totalorder %s21, 0
      %p163 = por %p161, %p162
      %s164 = ssub.s32 %s22, %s34
      %s165 = ssub.s32 %s23, %s30
      %s166 = sor.u32 %s164, %s165
      %p167 = scmp.eq.s32.totalorder %s166, 0
      %s169 = sadd.s32 %s168, 1
      %s170 = scalar_select %p167, %s168, %s169
      %p173 = pneg %p167
      %p174 = scmp.eq.s32.totalorder %s15, 1
      %p175 = por %p173, %p174
      %p176 = scmp.ne.s32.totalorder %s168, %s171
      %p177 = scmp.eq.s32.totalorder %s15, 0
      %p178 = por %p176, %p177
      %p179 = scmp.ne.s32.totalorder %s168, %s171
      %p180 = scmp.eq.s32.totalorder %s20, 1
      %p181 = por %p179, %p180
      %p182 = scmp.ne.s32.totalorder %s171, %s172
      %p183 = scmp.eq.s32.totalorder %s20, 0
      %p184 = por %p182, %p183
      %p185 = scmp.ne.s32.totalorder %s171, %s172
      %p186 = scmp.eq.s32.totalorder %s21, 1
      %p187 = por %p185, %p186
      %p189 = scmp.ne.s32.totalorder %s172, %s188
      %p190 = scmp.eq.s32.totalorder %s21, 0
      %p191 = por %p189, %p190
      %p192 = scmp.le.s32.totalorder 1, %s15
      %p193 = scmp.lt.s32.totalorder %s15, 3
      %p194 = pnand %p192, %p193
      %p195 = pneg %p194
      // Predicated region
      $region9: #{_dgm_adjacency.1} parent=5 // pred_check
        _
      $region10: #{_dgm_adjacency.1} parent=5 // pred_check_branch
        %197 = sbr.rel (%p194) target = $region12
      $region11: #{_dgm_adjacency.1} parent=5 // pred_region
        %s198 = ssub.s32 %s15, 1
        // Predicated region
        $region13: #{_dgm_adjacency.1} parent=11 // pred_check
          %p199 = pneg %p48
        $region14: #{_dgm_adjacency.1} parent=11 // pred_check_branch
          %201 = sbr.rel (%p199) target = $region16
        $region15: #{_dgm_adjacency.1} parent=11 // pred_region
          %203 = vsyncadd [#allocation4], 0
          %s205 = sshll.u32 %s0, 4
          %s206 = int_to_ptr.vmem [resolvable:$true] %s205
          %208 = dma.vmem_to_smem %s206, 16, [#allocation2], [#allocation4]
        $region16: #{_dgm_adjacency.1} parent=11 // pred_fallthru
          _
      $region12: #{_dgm_adjacency.1} parent=5 // pred_fallthru
        _
      %p209 = scmp.lt.s32.totalorder %s15, 2
      // Predicated region
      $region17: #{_dgm_adjacency.1} parent=5 // pred_check
        %p210 = pneg %p209
      $region18: #{_dgm_adjacency.1} parent=5 // pred_check_branch
        %212 = sbr.rel (%p210) target = $region20
      $region19: #{_dgm_adjacency.1} parent=5 // pred_region
        // Predicated region
        $region21: #{_dgm_adjacency.1} parent=19 // pred_check
          %p213 = pneg %p70
        $region22: #{_dgm_adjacency.1} parent=19 // pred_check_branch
          %215 = sbr.rel (%p213) target = $region24
        $region23: #{_dgm_adjacency.1} parent=19 // pred_region
          %s216 = smul.u32 2, %s23
          %p217 = scmp.lt.s32.totalorder %s22, 1
          %s218 = scalar_select %p217, %s22, 1
          %p219 = scmp.lt.s32.totalorder %s216, 1
          %s220 = scalar_select %p219, %s216, 1
          %s221 = smul.addr %s218, 2
          %s222 = sadd.s32 %s220, %s221
          %s223 = smul.addr %s222, 8
          %s224 = scalar_lea.vmem %s1, %s223
          %s225 = smul.u32 2, %s23
        $region24: #{_dgm_adjacency.1} parent=19 // pred_fallthru
          _
        // Predicated region
        $region25: #{_dgm_adjacency.1} parent=19 // pred_check
          %p226 = pneg %p96
        $region26: #{_dgm_adjacency.1} parent=19 // pred_check_branch
          %228 = sbr.rel (%p226) target = $region28
        $region27: #{_dgm_adjacency.1} parent=19 // pred_region
          %p229 = scmp.lt.s32.totalorder %s22, 1
          %s230 = scalar_select %p229, %s22, 1
          %s231 = smul.addr %s230, 4
          %s232 = scalar_lea.vmem %s2, %s231
        $region28: #{_dgm_adjacency.1} parent=19 // pred_fallthru
          _
        // Predicated region
        $region29: #{_dgm_adjacency.1} parent=19 // pred_check
          %p233 = pneg %p124
        $region30: #{_dgm_adjacency.1} parent=19 // pred_check_branch
          %235 = sbr.rel (%p233) target = $region32
        $region31: #{_dgm_adjacency.1} parent=19 // pred_region
          %s236 = smul.u32 2, %s23
          %p237 = scmp.lt.s32.totalorder %s22, 1
          %s238 = scalar_select %p237, %s22, 1
          %p239 = scmp.lt.s32.totalorder %s236, 1
          %s240 = scalar_select %p239, %s236, 1
          %s241 = smul.addr %s238, 2
          %s242 = sadd.s32 %s240, %s241
          %s243 = smul.addr %s242, 8
          %s244 = scalar_lea.vmem %s3, %s243
          %s245 = smul.u32 2, %s23
        $region32: #{_dgm_adjacency.1} parent=19 // pred_fallthru
          _
        // Predicated region
        $region33: #{_dgm_adjacency.1} parent=19 // pred_check
          %p246 = pneg %p150
        $region34: #{_dgm_adjacency.1} parent=19 // pred_check_branch
          %248 = sbr.rel (%p246) target = $region36
        $region35: #{_dgm_adjacency.1} parent=19 // pred_region
          %p249 = scmp.lt.s32.totalorder %s22, 1
          %s250 = scalar_select %p249, %s22, 1
          %s251 = scalar_lea.vmem %s4, %s250
        $region36: #{_dgm_adjacency.1} parent=19 // pred_fallthru
          _
      $region20: #{_dgm_adjacency.1} parent=5 // pred_fallthru
        _
      %p252 = scmp.le.s32.totalorder 1, %s15
      %p253 = scmp.lt.s32.totalorder %s15, 3
      %p254 = pnand %p252, %p253
      %p255 = pneg %p254
      // Predicated region
      $region37: #{_dgm_adjacency.1} parent=5 // pred_check
        _
      $region38: #{_dgm_adjacency.1} parent=5 // pred_check_branch
        %257 = sbr.rel (%p254) target = $region40
      $region39: #{_dgm_adjacency.1} parent=5 // pred_region
        %s258 = ssub.s32 %s15, 1
        // Predicated region
        $region41: #{_dgm_adjacency.1} parent=39 // pred_check
          %p259 = pneg %p48
        $region42: #{_dgm_adjacency.1} parent=39 // pred_check_branch
          %261 = sbr.rel (%p259) target = $region44
        $region43: #{_dgm_adjacency.1} parent=39 // pred_region
          %263 = dma.done [#allocation4], 16
        $region44: #{_dgm_adjacency.1} parent=39 // pred_fallthru
          _
        %264 = sfence
        %p265 = pneg %p48
        %p266 = pneg %p45
        %s267 = smul.u32 2, %s25
        %p268 = scmp.lt.s32.totalorder %s24, 1
        %s269 = scalar_select %p268, %s24, 1
        %p270 = scmp.lt.s32.totalorder %s267, 1
        %s271 = scalar_select %p270, %s267, 1
        %s272 = smul.addr %s269, 2
        %s273 = sadd.s32 %s271, %s272
        %s274 = smul.addr %s273, 8
        %s275 = scalar_lea.vmem %s1, %s274
        %p276 = pneg %p76
        %p277 = pneg %p73
        %p278 = scmp.lt.s32.totalorder %s24, 1
        %s279 = scalar_select %p278, %s24, 1
        %s280 = smul.addr %s279, 4
        %s281 = scalar_lea.vmem %s2, %s280
        %p282 = pneg %p102
        %p283 = pneg %p99
        %s284 = smul.u32 2, %s25
        %p285 = scmp.lt.s32.totalorder %s24, 1
        %s286 = scalar_select %p285, %s24, 1
        %p287 = scmp.lt.s32.totalorder %s284, 1
        %s288 = scalar_select %p287, %s284, 1
        %s289 = smul.addr %s286, 2
        %s290 = sadd.s32 %s288, %s289
        %s291 = smul.addr %s290, 8
        %s292 = scalar_lea.vmem %s3, %s291
        %p293 = pneg %p130
        %p294 = pneg %p127
        %p295 = scmp.lt.s32.totalorder %s24, 1
        %s296 = scalar_select %p295, %s24, 1
        %s297 = scalar_lea.vmem %s4, %s296
        %p298 = pneg %p156
        %p299 = pneg %p153
        %p300 = pneg %p184
        %p301 = pneg %p181
        %s302 = sand.u32 %s171, 1
        %s303 = scalar_lea.sflag [#allocation3], %s302
        %s304 = sand.u32 %s171, 1
        %s305 = smul.addr %s304, 16
        %s306 = scalar_lea.vmem [#allocation5], %s305
        %s307 = smul.u32 2, %s25
        %p308 = scmp.lt.s32.totalorder %s24, 1
        %s309 = scalar_select %p308, %s24, 1
        %p310 = scmp.lt.s32.totalorder %s307, 1
        %s311 = scalar_select %p310, %s307, 1
        %s312 = smul.addr %s309, 2
        %s313 = sadd.s32 %s311, %s312
        %s314 = smul.addr %s313, 8
        %s315 = scalar_lea.vmem %s1, %s314
        %s316 = smul.u32 2, %s25
        %p317 = scmp.lt.s32.totalorder %s24, 1
        %s318 = scalar_select %p317, %s24, 1
        %s319 = smul.addr %s318, 4
        %s320 = scalar_lea.vmem %s2, %s319
        %s321 = smul.u32 2, %s25
        %p322 = scmp.lt.s32.totalorder %s24, 1
        %s323 = scalar_select %p322, %s24, 1
        %p324 = scmp.lt.s32.totalorder %s321, 1
        %s325 = scalar_select %p324, %s321, 1
        %s326 = smul.addr %s323, 2
        %s327 = sadd.s32 %s325, %s326
        %s328 = smul.addr %s327, 8
        %s329 = scalar_lea.vmem %s3, %s328
        %s330 = smul.u32 2, %s25
        %p331 = scmp.lt.s32.totalorder %s24, 1
        %s332 = scalar_select %p331, %s24, 1
        %s333 = scalar_lea.vmem %s4, %s332
        %s334 = smul.u32 2, %s25
        %s335 = sld [smem:[#allocation2]]
        %s336 = sld [smem:[#allocation2 + $0x1]]
        %v337 = vld [vmem:[%s315] sm:$0xff]
        %v338 = vld [vmem:[%s315 + $0x8] sm:$0xff]
        %v339 = vld [vmem:[%s320] sm:$0xf]
        %v340 = vld [vmem:[%s329] sm:$0xff]
        %v341 = vld [vmem:[%s329 + $0x8] sm:$0xff]
        %v342 = vld [vmem:[%s333] sm:$0x1]
        %vm343 = vcmask 31744
        %v345 = vsel %vm343, %v337, 0
        %v348 = vsel %vm343, %v338, 0
        %vm350 = vcmask 1043456
        %v352 = vsel %vm350, %v339, 0
        %354 = vmatpush.msra.mxu0 0.0
        %355 = vmatpush.msra.mxu0 0.0
        %356 = vmatpush.msra.mxu0 0.0
        %357 = vmatpush.msra.mxu0 0.0
        %358 = vmatpush.msra.mxu0 0.0
        %359 = vmatpush.msra.mxu0 0.0
        %360 = vmatpush.msra.mxu0 0.0
        %361 = vmatpush.msra.mxu0 0.0
        %362 = vmatpush.msra.mxu0 0.0
        %363 = vmatpush.msra.mxu0 0.0
        %364 = vmatpush.msra.mxu0 0.0
        %365 = vmatpush.msra.mxu0 0.0
        %366 = vmatpush.msra.mxu0 0.0
        %367 = vmatpush.msra.mxu0 0.0
        %368 = vmatpush.msra.mxu0 0.0
        %369 = vmatpush.msra.mxu0 %v352
        %370 = vmatmul.f32.gmra.mxu0 %v345
        %v371 = vpop.f32.mrf.mxu0
        %v372 = vadd.f32 0.0, %v371
        %373 = vmatmul.f32.gmra.mxu0 %v348
        %v374 = vpop.f32.mrf.mxu0
        %v375 = vadd.f32 0.0, %v374
        %376 = vdwg.mxu0
        %378 = vset.pattern.permute.xlu0 0
        %379 = vperm.xlu0 %378, %v340
        %v380 = vpop.permute.xlu0 %379
        %383 = vset.pattern.permute.xlu0 0
        %384 = vperm.xlu0 %383, %v341
        %v385 = vpop.permute.xlu0 %384
        %v388 = vperm.slane %v342, 0
        %v390 = vadd.f32 %v380, %v388
        %v391 = vadd.f32 %v385, %v388
        %v392 = vmul.f32 %v372, 2.0
        %v393 = vmul.f32 %v375, 2.0
        %v394 = vsub.f32 %v390, %v392
        %v395 = vsub.f32 %v391, %v393
        %v396 = vmax.f32 %v394, 0.0
        %v397 = vmax.f32 %v395, 0.0
        %v398 = vstv %s336
        %v399 = vsub.f32 %v398, %v396
        %v400 = vsub.f32 %v398, %v397
        %v401 = vstv %s335
        %v402 = vmul.f32 %v401, %v399
        %v403 = vmul.f32 %v401, %v400
        %v404 = vmul.f32 %v402, 0.5
        %v405 = vmul.f32 %v403, 0.5
        %v406 = vtanh.pop %v404
        %v407 = vtanh.pop %v405
        %v408 = vmul.f32 %v406, 0.5
        %v409 = vmul.f32 %v407, 0.5
        %v410 = vadd.f32 %v408, 0.5
        %v411 = vadd.f32 %v409, 0.5
        %vm412 = vcmask 130048
        %413 = vst.msk [vmem:[%s306] sm:$0xff] %vm412, %v410
        %414 = vst.msk [vmem:[%s306 + $0x8] sm:$0xff] %vm412, %v411
        %s415 = sand.u32 %s171, 1
        %s416 = scalar_lea.sflag [#allocation3], %s415
        %s417 = sand.u32 %s171, 1
        %s418 = smul.addr %s417, 16
        %s419 = scalar_lea.vmem [#allocation5], %s418
        // Predicated region
        $region45: #{_dgm_adjacency.1} parent=39 // pred_check
          %p420 = pneg %p181
        $region46: #{_dgm_adjacency.1} parent=39 // pred_check_branch
          %422 = sbr.rel (%p420) target = $region48
        $region47: #{_dgm_adjacency.1} parent=39 // pred_region
          %s423 = smul.u32 2, %s25
          %425 = vsyncadd %s416, 0
          %s426 = smul.addr %s24, 2
          %s427 = sadd.s32 %s423, %s426
          %s428 = smul.addr %s427, 8
          %s429 = scalar_lea.hbm %s5, %s428
          %s430 = sshll.u32 %s419, 4
          %s431 = int_to_ptr.vmem [resolvable:$true] %s430
          %s432 = sshll.u32 %s429, 4
          %s433 = int_to_ptr.hbm [resolvable:$true] %s432
          %438 = dma.vmem_to_hbm [thread:$0]  %s431, 256, %s433, %s416, 128, 128, 8
        $region48: #{_dgm_adjacency.1} parent=39 // pred_fallthru
          _
      $region40: #{_dgm_adjacency.1} parent=5 // pred_fallthru
        _
      %p439 = scmp.le.s32.totalorder 2, %s15
      // Predicated region
      $region49: #{_dgm_adjacency.1} parent=5 // pred_check
        %p440 = pneg %p439
      $region50: #{_dgm_adjacency.1} parent=5 // pred_check_branch
        %442 = sbr.rel (%p440) target = $region52
      $region51: #{_dgm_adjacency.1} parent=5 // pred_region
        %s443 = ssub.s32 %s15, 2
        // Predicated region
        $region53: #{_dgm_adjacency.1} parent=51 // pred_check
          %p444 = pneg %p187
        $region54: #{_dgm_adjacency.1} parent=51 // pred_check_branch
          %446 = sbr.rel (%p444) target = $region56
        $region55: #{_dgm_adjacency.1} parent=51 // pred_region
          %s447 = sand.u32 %s172, 1
          %s448 = scalar_lea.sflag [#allocation3], %s447
          %s449 = sand.u32 %s172, 1
          %s450 = smul.addr %s449, 16
          %s451 = scalar_lea.vmem [#allocation5], %s450
          %453 = dma.done %s448, 256
        $region56: #{_dgm_adjacency.1} parent=51 // pred_fallthru
          _
      $region52: #{_dgm_adjacency.1} parent=5 // pred_fallthru
        _
    $region6: #{_dgm_adjacency.1} parent=1 // loop_footer
      %s19 = sadd.s32 1, %s15
    $region7: #{_dgm_adjacency.1} parent=1 // loop_footer_branch
      %14 = sbr.rel target = $region3
    $region8: #{_dgm_adjacency.1} parent=1 // loop_exit
      _
    %454 = vsyncpa [#allocation3], 1
    %s455 = scalar_lea.sflag [#allocation3], 1
    %456 = vsyncpa %s455, 1
    %457 = vsyncpa [#allocation4], 1
    %s458 = scalar_lea.sflag [#allocation4], 1
    %459 = vsyncpa %s458, 1

</llo_original>
